<compile_context>
chip_gen: v7x
topology: tpu7x:2x2x1
jax: 0.10.0
libtpu: 0.0.40
codegen_flags: <defaults>
</compile_context>

<pallas_src>
import functools

import jax
import jax.numpy as jnp
from jax.experimental import pallas as pl
from jax.experimental.pallas import tpu as pltpu

EPS = 1e-5
KH = KW = 3


def _fused_conv3x3_bn_relu(x, wmat, b, gamma, beta, mask, inv_cnt, W):
    """One conv3x3(valid) + training-mode BN + ReLU layer.

    x:     (Cp, S) f32, S = N*H*W flattened n-major, then h, then w; padded
           channel rows (>= true C) are all-zero.
    wmat:  (Cp, 9*Cp) f32, wmat[co, (dy*3+dx)*Cp + ci] = w[dy, dx, ci, co]
           (zero for padded ci / co).
    b, gamma, beta: (Cp, 1) f32 (zero on padded rows).
    mask:  (1, S) f32, 1.0 where the conv output position is valid.
    inv_cnt: python float, 1 / (N * Ho * Wo).

    Returns (Cp, S) f32. Positions outside the valid region hold junk that is
    never read by downstream valid outputs; padded channel rows stay zero.
    """
    Cp, S = x.shape

    # 9 shifted taps: tap (dy, dx) needs x[..., p + dy*W + dx], i.e. a lane
    # rotation by S - (dy*W + dx). Wrapped elements only land on positions the
    # valid conv discards (masked out of the stats below).
    taps = []
    for dy in range(KH):
        for dx in range(KW):
            d = dy * W + dx
            taps.append(x if d == 0 else pltpu.roll(x, shift=S - d, axis=1))
    r = jnp.concatenate(taps, axis=0)                       # (9*Cp, S), aligned

    # Single im2col matmul on the MXU (f32 accumulate) + conv bias.
    acc = jnp.dot(wmat, r, preferred_element_type=jnp.float32) + b   # (Cp, S)

    # Training-mode BatchNorm folded into one per-channel scale/shift
    # (one-pass masked sum / sum-of-squares, biased variance, clamped >= 0).
    s1 = jnp.sum(acc * mask, axis=1, keepdims=True)         # (Cp, 1)
    s2 = jnp.sum(acc * acc * mask, axis=1, keepdims=True)   # (Cp, 1)
    mean = s1 * inv_cnt
    var = jnp.maximum(s2 * inv_cnt - mean * mean, 0.0)
    scale = gamma * jax.lax.rsqrt(var + EPS)                # EUP
    shift = beta - mean * scale
    return jnp.maximum(acc * scale + shift, 0.0)            # BN + ReLU, one pass


def conv_block_kernel(x_ref, wm1_ref, b1_ref, g1_ref, be1_ref,
                      wm2_ref, b2_ref, g2_ref, be2_ref,
                      m1_ref, m2_ref, o_ref, *, W, inv_cnt1, inv_cnt2):
    h1 = _fused_conv3x3_bn_relu(x_ref[...], wm1_ref[...], b1_ref[...],
                                g1_ref[...], be1_ref[...], m1_ref[...],
                                inv_cnt1, W)
    h2 = _fused_conv3x3_bn_relu(h1, wm2_ref[...], b2_ref[...],
                                g2_ref[...], be2_ref[...], m2_ref[...],
                                inv_cnt2, W)
    o_ref[...] = h2


def conv_block_forward(x_nchw, params):
    """x_nchw: (N, C, H, W) float32. Returns (N, C, H-4, W-4) float32."""
    w1, b1, g1, be1, w2, b2, g2, be2 = params
    N, C, H, W = x_nchw.shape
    Ho1, Wo1 = H - 2, W - 2
    Ho2, Wo2 = H - 4, W - 4
    S = N * H * W
    Cp = ((C + 7) // 8) * 8          # pad channels to a full sublane group
    f32 = jnp.float32

    # ---- interface plumbing (few KB, one-off XLA ops outside the kernel) ----
    # Lane-dense kernel layout: (Cp, N*H*W); channels on sublanes.
    x_k = jnp.transpose(x_nchw.astype(f32), (1, 0, 2, 3)).reshape(C, S)
    x_k = jnp.pad(x_k, ((0, Cp - C), (0, 0)))

    def prep_conv(w):    # (3,3,C,C) HWIO -> (Cp, 9*Cp) im2col LHS
        wp = jnp.pad(w.astype(f32), ((0, 0), (0, 0), (0, Cp - C), (0, Cp - C)))
        return jnp.transpose(wp.reshape(KH * KW * Cp, Cp))

    def prep_vec(v):     # (1, C) -> (Cp, 1), zero on padded rows
        return jnp.pad(v.astype(f32).reshape(C, 1), ((0, Cp - C), (0, 0)))

    wm1, wm2 = prep_conv(w1), prep_conv(w2)
    b1c, g1c, be1c = prep_vec(b1), prep_vec(g1), prep_vec(be1)
    b2c, g2c, be2c = prep_vec(b2), prep_vec(g2), prep_vec(be2)

    # 0/1 masks of valid conv-output positions on the full flat grid.
    def valid_mask(ho, wo):
        m = (jnp.arange(H) < ho)[:, None] & (jnp.arange(W) < wo)[None, :]
        return jnp.tile(m.reshape(1, H * W), (1, N)).astype(f32)    # (1, S)

    m1, m2 = valid_mask(Ho1, Wo1), valid_mask(Ho2, Wo2)

    kernel = functools.partial(
        conv_block_kernel, W=W,
        inv_cnt1=1.0 / float(N * Ho1 * Wo1),
        inv_cnt2=1.0 / float(N * Ho2 * Wo2))

    vmem = pl.BlockSpec(memory_space=pltpu.MemorySpace.VMEM)
    out_flat = pl.pallas_call(
        kernel,
        out_shape=jax.ShapeDtypeStruct((Cp, S), f32),
        in_specs=[vmem] * 11,
        out_specs=vmem,
    )(x_k, wm1, b1c, g1c, be1c, wm2, b2c, g2c, be2c, m1, m2)

    # Crop valid channels / spatial region and restore NCHW.
    out = out_flat[:C].reshape(C, N, H, W)[:, :, :Ho2, :Wo2]
    return jnp.transpose(out, (1, 0, 2, 3))


def init_params(key, c):
    """Deterministic synthetic parameters (shapes match the PyTorch module)."""
    ks = jax.random.split(key, 8)
    w1 = 0.1 * jax.random.normal(ks[0], (3, 3, c, c), jnp.float32)   # HWIO
    b1 = 0.1 * jax.random.normal(ks[1], (1, c), jnp.float32)
    g1 = 1.0 + 0.1 * jax.random.normal(ks[2], (1, c), jnp.float32)
    be1 = 0.1 * jax.random.normal(ks[3], (1, c), jnp.float32)
    w2 = 0.1 * jax.random.normal(ks[4], (3, 3, c, c), jnp.float32)
    b2 = 0.1 * jax.random.normal(ks[5], (1, c), jnp.float32)
    g2 = 1.0 + 0.1 * jax.random.normal(ks[6], (1, c), jnp.float32)
    be2 = 0.1 * jax.random.normal(ks[7], (1, c), jnp.float32)
    return (w1, b1, g1, be1, w2, b2, g2, be2)


def _reference_forward(x_nchw, params):
    """Pure-JAX reference (same math), used only for correctness checking."""
    w1, b1, g1, be1, w2, b2, g2, be2 = params
    dn = jax.lax.conv_dimension_numbers(
        (1, 1, 1, 1), (1, 1, 1, 1), ("NHWC", "HWIO", "NHWC"))

    def block(x, w, b, g, be):
        y = jax.lax.conv_general_dilated(x, w, (1, 1), "VALID",
                                         dimension_numbers=dn) + b.reshape(1, 1, 1, -1)
        mean = jnp.mean(y, axis=(0, 1, 2), keepdims=True)
        var = jnp.mean((y - mean) ** 2, axis=(0, 1, 2), keepdims=True)
        y = (y - mean) * jax.lax.rsqrt(var + EPS) * g.reshape(1, 1, 1, -1) \
            + be.reshape(1, 1, 1, -1)
        return jnp.maximum(y, 0.0)

    x = jnp.transpose(x_nchw, (0, 2, 3, 1))
    h = block(x, w1, b1, g1, be1)
    h = block(h, w2, b2, g2, be2)
    return jnp.transpose(h, (0, 3, 1, 2))


if __name__ == "__main__":
    key = jax.random.PRNGKey(0)
    k_x, k_p = jax.random.split(key)

    N, C, H, W = 2, 4, 16, 16          # small shapes consistent with the module
    x = jax.random.normal(k_x, (N, C, H, W), jnp.float32)
    params = init_params(k_p, C)

    out = jax.block_until_ready(conv_block_forward(x, params))
    ref = jax.block_until_ready(_reference_forward(x, params))

    assert out.shape == (N, C, H - 4, W - 4), out.shape
    max_err = float(jnp.max(jnp.abs(out - ref)))
    assert jnp.allclose(out, ref, atol=2e-4, rtol=2e-4), max_err

    print("KERNEL_OK")
</pallas_src>

<mosaic_0001>
module attributes {stable_mosaic.version = 11 : i64} {
  func.func @conv_block_kernel(%arg0: memref<8x512xf32, #tpu.memory_space<vmem>>, %arg1: memref<8x72xf32, #tpu.memory_space<vmem>>, %arg2: memref<8x1xf32, #tpu.memory_space<vmem>>, %arg3: memref<8x1xf32, #tpu.memory_space<vmem>>, %arg4: memref<8x1xf32, #tpu.memory_space<vmem>>, %arg5: memref<8x72xf32, #tpu.memory_space<vmem>>, %arg6: memref<8x1xf32, #tpu.memory_space<vmem>>, %arg7: memref<8x1xf32, #tpu.memory_space<vmem>>, %arg8: memref<8x1xf32, #tpu.memory_space<vmem>>, %arg9: memref<1x512xf32, #tpu.memory_space<vmem>>, %arg10: memref<1x512xf32, #tpu.memory_space<vmem>>, %arg11: memref<8x512xf32, #tpu.memory_space<vmem>>) attributes {dimension_semantics = [], scalar_prefetch = 0 : i64, scratch_operands = 0 : i64, tpu.core_type = #tpu.core_type<tc>} {
    %c0 = arith.constant 0 : index
    %c0_0 = arith.constant 0 : index
    %0 = vector.load %arg0[%c0, %c0_0] : memref<8x512xf32, #tpu.memory_space<vmem>>, vector<8x512xf32>
    %c0_1 = arith.constant 0 : index
    %c0_2 = arith.constant 0 : index
    %1 = vector.load %arg1[%c0_1, %c0_2] : memref<8x72xf32, #tpu.memory_space<vmem>>, vector<8x72xf32>
    %c0_3 = arith.constant 0 : index
    %c0_4 = arith.constant 0 : index
    %2 = vector.load %arg2[%c0_3, %c0_4] : memref<8x1xf32, #tpu.memory_space<vmem>>, vector<8x1xf32>
    %c0_5 = arith.constant 0 : index
    %c0_6 = arith.constant 0 : index
    %3 = vector.load %arg3[%c0_5, %c0_6] : memref<8x1xf32, #tpu.memory_space<vmem>>, vector<8x1xf32>
    %c0_7 = arith.constant 0 : index
    %c0_8 = arith.constant 0 : index
    %4 = vector.load %arg4[%c0_7, %c0_8] : memref<8x1xf32, #tpu.memory_space<vmem>>, vector<8x1xf32>
    %c0_9 = arith.constant 0 : index
    %c0_10 = arith.constant 0 : index
    %5 = vector.load %arg9[%c0_9, %c0_10] : memref<1x512xf32, #tpu.memory_space<vmem>>, vector<1x512xf32>
    %c511_i32 = arith.constant 511 : i32
    %6 = tpu.dynamic_rotate %0 by %c511_i32 dim 1 : vector<8x512xf32>, i32 -> vector<8x512xf32>
    %c510_i32 = arith.constant 510 : i32
    %7 = tpu.dynamic_rotate %0 by %c510_i32 dim 1 : vector<8x512xf32>, i32 -> vector<8x512xf32>
    %c496_i32 = arith.constant 496 : i32
    %8 = tpu.dynamic_rotate %0 by %c496_i32 dim 1 : vector<8x512xf32>, i32 -> vector<8x512xf32>
    %c495_i32 = arith.constant 495 : i32
    %9 = tpu.dynamic_rotate %0 by %c495_i32 dim 1 : vector<8x512xf32>, i32 -> vector<8x512xf32>
    %c494_i32 = arith.constant 494 : i32
    %10 = tpu.dynamic_rotate %0 by %c494_i32 dim 1 : vector<8x512xf32>, i32 -> vector<8x512xf32>
    %c480_i32 = arith.constant 480 : i32
    %11 = tpu.dynamic_rotate %0 by %c480_i32 dim 1 : vector<8x512xf32>, i32 -> vector<8x512xf32>
    %c479_i32 = arith.constant 479 : i32
    %12 = tpu.dynamic_rotate %0 by %c479_i32 dim 1 : vector<8x512xf32>, i32 -> vector<8x512xf32>
    %c478_i32 = arith.constant 478 : i32
    %13 = tpu.dynamic_rotate %0 by %c478_i32 dim 1 : vector<8x512xf32>, i32 -> vector<8x512xf32>
    %14 = tpu.concatenate %0, %6, %7, %8, %9, %10, %11, %12, %13 in 0 : vector<8x512xf32>, vector<8x512xf32>, vector<8x512xf32>, vector<8x512xf32>, vector<8x512xf32>, vector<8x512xf32>, vector<8x512xf32>, vector<8x512xf32>, vector<8x512xf32> -> vector<72x512xf32>
    %cst = arith.constant dense<0.000000e+00> : vector<8x512xf32>
    %15 = tpu.matmul %1, %14, %cst {dimension_numbers = #tpu.dot_dimension_numbers<[1], [0], [0], [1], [0, 0, 1, 1], [], []>} : vector<8x72xf32>, vector<72x512xf32>, vector<8x512xf32> -> vector<8x512xf32>
    %16 = vector.broadcast %2 : vector<8x1xf32> to vector<8x512xf32>
    %17 = arith.addf %15, %16 : vector<8x512xf32>
    %18 = vector.broadcast %5 : vector<1x512xf32> to vector<8x512xf32>
    %19 = arith.mulf %17, %18 : vector<8x512xf32>
    %cst_11 = arith.constant dense<0.000000e+00> : vector<8xf32>
    %20 = vector.multi_reduction <add>, %19, %cst_11 [1] : vector<8x512xf32> to vector<8xf32>
    %21 = vector.shape_cast %20 : vector<8xf32> to vector<8x1xf32>
    %22 = arith.mulf %17, %17 : vector<8x512xf32>
    %23 = vector.broadcast %5 : vector<1x512xf32> to vector<8x512xf32>
    %24 = arith.mulf %22, %23 : vector<8x512xf32>
    %cst_12 = arith.constant dense<0.000000e+00> : vector<8xf32>
    %25 = vector.multi_reduction <add>, %24, %cst_12 [1] : vector<8x512xf32> to vector<8xf32>
    %26 = vector.shape_cast %25 : vector<8xf32> to vector<8x1xf32>
    %cst_13 = arith.constant 0.00255102036 : f32
    %27 = vector.broadcast %cst_13 : f32 to vector<8x1xf32>
    %28 = arith.mulf %21, %27 : vector<8x1xf32>
    %cst_14 = arith.constant 0.00255102036 : f32
    %29 = vector.broadcast %cst_14 : f32 to vector<8x1xf32>
    %30 = arith.mulf %26, %29 : vector<8x1xf32>
    %31 = arith.mulf %28, %28 : vector<8x1xf32>
    %32 = arith.subf %30, %31 : vector<8x1xf32>
    %cst_15 = arith.constant 0.000000e+00 : f32
    %33 = vector.broadcast %cst_15 : f32 to vector<8x1xf32>
    %34 = arith.maximumf %32, %33 : vector<8x1xf32>
    %cst_16 = arith.constant 9.99999974E-6 : f32
    %35 = vector.broadcast %cst_16 : f32 to vector<8x1xf32>
    %36 = arith.addf %34, %35 : vector<8x1xf32>
    %37 = math.rsqrt %36 : vector<8x1xf32>
    %38 = arith.mulf %3, %37 : vector<8x1xf32>
    %39 = arith.mulf %28, %38 : vector<8x1xf32>
    %40 = arith.subf %4, %39 : vector<8x1xf32>
    %41 = vector.broadcast %38 : vector<8x1xf32> to vector<8x512xf32>
    %42 = arith.mulf %17, %41 : vector<8x512xf32>
    %43 = vector.broadcast %40 : vector<8x1xf32> to vector<8x512xf32>
    %44 = arith.addf %42, %43 : vector<8x512xf32>
    %cst_17 = arith.constant 0.000000e+00 : f32
    %45 = vector.broadcast %cst_17 : f32 to vector<8x512xf32>
    %46 = arith.maximumf %44, %45 : vector<8x512xf32>
    %c0_18 = arith.constant 0 : index
    %c0_19 = arith.constant 0 : index
    %47 = vector.load %arg5[%c0_18, %c0_19] : memref<8x72xf32, #tpu.memory_space<vmem>>, vector<8x72xf32>
    %c0_20 = arith.constant 0 : index
    %c0_21 = arith.constant 0 : index
    %48 = vector.load %arg6[%c0_20, %c0_21] : memref<8x1xf32, #tpu.memory_space<vmem>>, vector<8x1xf32>
    %c0_22 = arith.constant 0 : index
    %c0_23 = arith.constant 0 : index
    %49 = vector.load %arg7[%c0_22, %c0_23] : memref<8x1xf32, #tpu.memory_space<vmem>>, vector<8x1xf32>
    %c0_24 = arith.constant 0 : index
    %c0_25 = arith.constant 0 : index
    %50 = vector.load %arg8[%c0_24, %c0_25] : memref<8x1xf32, #tpu.memory_space<vmem>>, vector<8x1xf32>
    %c0_26 = arith.constant 0 : index
    %c0_27 = arith.constant 0 : index
    %51 = vector.load %arg10[%c0_26, %c0_27] : memref<1x512xf32, #tpu.memory_space<vmem>>, vector<1x512xf32>
    %c511_i32_28 = arith.constant 511 : i32
    %52 = tpu.dynamic_rotate %46 by %c511_i32_28 dim 1 : vector<8x512xf32>, i32 -> vector<8x512xf32>
    %c510_i32_29 = arith.constant 510 : i32
    %53 = tpu.dynamic_rotate %46 by %c510_i32_29 dim 1 : vector<8x512xf32>, i32 -> vector<8x512xf32>
    %c496_i32_30 = arith.constant 496 : i32
    %54 = tpu.dynamic_rotate %46 by %c496_i32_30 dim 1 : vector<8x512xf32>, i32 -> vector<8x512xf32>
    %c495_i32_31 = arith.constant 495 : i32
    %55 = tpu.dynamic_rotate %46 by %c495_i32_31 dim 1 : vector<8x512xf32>, i32 -> vector<8x512xf32>
    %c494_i32_32 = arith.constant 494 : i32
    %56 = tpu.dynamic_rotate %46 by %c494_i32_32 dim 1 : vector<8x512xf32>, i32 -> vector<8x512xf32>
    %c480_i32_33 = arith.constant 480 : i32
    %57 = tpu.dynamic_rotate %46 by %c480_i32_33 dim 1 : vector<8x512xf32>, i32 -> vector<8x512xf32>
    %c479_i32_34 = arith.constant 479 : i32
    %58 = tpu.dynamic_rotate %46 by %c479_i32_34 dim 1 : vector<8x512xf32>, i32 -> vector<8x512xf32>
    %c478_i32_35 = arith.constant 478 : i32
    %59 = tpu.dynamic_rotate %46 by %c478_i32_35 dim 1 : vector<8x512xf32>, i32 -> vector<8x512xf32>
    %60 = tpu.concatenate %46, %52, %53, %54, %55, %56, %57, %58, %59 in 0 : vector<8x512xf32>, vector<8x512xf32>, vector<8x512xf32>, vector<8x512xf32>, vector<8x512xf32>, vector<8x512xf32>, vector<8x512xf32>, vector<8x512xf32>, vector<8x512xf32> -> vector<72x512xf32>
    %cst_36 = arith.constant dense<0.000000e+00> : vector<8x512xf32>
    %61 = tpu.matmul %47, %60, %cst_36 {dimension_numbers = #tpu.dot_dimension_numbers<[1], [0], [0], [1], [0, 0, 1, 1], [], []>} : vector<8x72xf32>, vector<72x512xf32>, vector<8x512xf32> -> vector<8x512xf32>
    %62 = vector.broadcast %48 : vector<8x1xf32> to vector<8x512xf32>
    %63 = arith.addf %61, %62 : vector<8x512xf32>
    %64 = vector.broadcast %51 : vector<1x512xf32> to vector<8x512xf32>
    %65 = arith.mulf %63, %64 : vector<8x512xf32>
    %cst_37 = arith.constant dense<0.000000e+00> : vector<8xf32>
    %66 = vector.multi_reduction <add>, %65, %cst_37 [1] : vector<8x512xf32> to vector<8xf32>
    %67 = vector.shape_cast %66 : vector<8xf32> to vector<8x1xf32>
    %68 = arith.mulf %63, %63 : vector<8x512xf32>
    %69 = vector.broadcast %51 : vector<1x512xf32> to vector<8x512xf32>
    %70 = arith.mulf %68, %69 : vector<8x512xf32>
    %cst_38 = arith.constant dense<0.000000e+00> : vector<8xf32>
    %71 = vector.multi_reduction <add>, %70, %cst_38 [1] : vector<8x512xf32> to vector<8xf32>
    %72 = vector.shape_cast %71 : vector<8xf32> to vector<8x1xf32>
    %cst_39 = arith.constant 0.00347222225 : f32
    %73 = vector.broadcast %cst_39 : f32 to vector<8x1xf32>
    %74 = arith.mulf %67, %73 : vector<8x1xf32>
    %cst_40 = arith.constant 0.00347222225 : f32
    %75 = vector.broadcast %cst_40 : f32 to vector<8x1xf32>
    %76 = arith.mulf %72, %75 : vector<8x1xf32>
    %77 = arith.mulf %74, %74 : vector<8x1xf32>
    %78 = arith.subf %76, %77 : vector<8x1xf32>
    %cst_41 = arith.constant 0.000000e+00 : f32
    %79 = vector.broadcast %cst_41 : f32 to vector<8x1xf32>
    %80 = arith.maximumf %78, %79 : vector<8x1xf32>
    %cst_42 = arith.constant 9.99999974E-6 : f32
    %81 = vector.broadcast %cst_42 : f32 to vector<8x1xf32>
    %82 = arith.addf %80, %81 : vector<8x1xf32>
    %83 = math.rsqrt %82 : vector<8x1xf32>
    %84 = arith.mulf %49, %83 : vector<8x1xf32>
    %85 = arith.mulf %74, %84 : vector<8x1xf32>
    %86 = arith.subf %50, %85 : vector<8x1xf32>
    %87 = vector.broadcast %84 : vector<8x1xf32> to vector<8x512xf32>
    %88 = arith.mulf %63, %87 : vector<8x512xf32>
    %89 = vector.broadcast %86 : vector<8x1xf32> to vector<8x512xf32>
    %90 = arith.addf %88, %89 : vector<8x512xf32>
    %cst_43 = arith.constant 0.000000e+00 : f32
    %91 = vector.broadcast %cst_43 : f32 to vector<8x512xf32>
    %92 = arith.maximumf %90, %91 : vector<8x512xf32>
    %c0_44 = arith.constant 0 : index
    %c0_45 = arith.constant 0 : index
    %93 = vector.load %arg11[%c0_44, %c0_45] : memref<8x512xf32, #tpu.memory_space<vmem>>, vector<8x512xf32>
    tpu.vector_store %arg11[%c0_44, %c0_45], %92 {strides = array<i32>} : memref<8x512xf32, #tpu.memory_space<vmem>>, vector<8x512xf32>,
    return
  }
}

</mosaic_0001>

<llo_original>
// kernel: tpu_custom_call.1
$region0: #{tpu_custom_call.1}
  #allocation0 [shape = 'u32[]', space=smem, size = 0x4, offset = 0x4, fixed_abs, tag = 'smem constant byte address 0x4 - core index']
  #allocation1 [shape = 'u32[144,128]{1,0:T(1,128)}', space=vmem, size = 0x12000, scoped, tag = 'internal scratch']
  %s0 = inlined_call_operand.vmem [shape: f32[8,512], index: 0, kind: input, shape index: {}]
  %s1 = inlined_call_operand.vmem [shape: f32[8,72], index: 1, kind: input, shape index: {}]
  %s2 = inlined_call_operand.vmem [shape: f32[8,1], index: 2, kind: input, shape index: {}]
  %s3 = inlined_call_operand.vmem [shape: f32[8,1], index: 3, kind: input, shape index: {}]
  %s4 = inlined_call_operand.vmem [shape: f32[8,1], index: 4, kind: input, shape index: {}]
  %s5 = inlined_call_operand.vmem [shape: f32[8,72], index: 5, kind: input, shape index: {}]
  %s6 = inlined_call_operand.vmem [shape: f32[8,1], index: 6, kind: input, shape index: {}]
  %s7 = inlined_call_operand.vmem [shape: f32[8,1], index: 7, kind: input, shape index: {}]
  %s8 = inlined_call_operand.vmem [shape: f32[8,1], index: 8, kind: input, shape index: {}]
  %s9 = inlined_call_operand.vmem [shape: f32[1,512], index: 9, kind: input, shape index: {}]
  %s10 = inlined_call_operand.vmem [shape: f32[1,512], index: 10, kind: input, shape index: {}]
  %s11 = inlined_call_operand.hbm [shape: f32[8,512], index: 11, kind: output, shape index: {}]
  %s12 = sld [smem:[#allocation0]]
  $region54: #{tpu_custom_call.1} parent=0
    _
  %s14 = ssub.s32 1, %s12
  %s15 = scalar_select 0, %s14, %s12
  $region1: #{tpu_custom_call.1} parent=0
    #allocation2 [shape = 'u8[16384]{0}', space=vmem, size = 0x4000, scoped, tag = 'output window, operand 0, single buffered']
    #allocation3 [shape = 's32[1]{0}', space=sflag, size = 0x4, scoped, tag = 'scoped memory for tpu_custom_call.1']
    %16 = vsyncpa [#allocation3], 0
    // Predicated region
    $region2: #{tpu_custom_call.1} parent=1 // pred_check
      _
    $region3: #{tpu_custom_call.1} parent=1 // pred_check_branch
      %18 = sbr.rel (0) target = $region5
    $region4: #{tpu_custom_call.1} parent=1 // pred_region
      _
    $region5: #{tpu_custom_call.1} parent=1 // pred_fallthru
      _
    // Predicated region
    $region6: #{tpu_custom_call.1} parent=1 // pred_check
      _
    $region7: #{tpu_custom_call.1} parent=1 // pred_check_branch
      %20 = sbr.rel (0) target = $region9
    $region8: #{tpu_custom_call.1} parent=1 // pred_region
      _
    $region9: #{tpu_custom_call.1} parent=1 // pred_fallthru
      _
    // Predicated region
    $region10: #{tpu_custom_call.1} parent=1 // pred_check
      _
    $region11: #{tpu_custom_call.1} parent=1 // pred_check_branch
      %22 = sbr.rel (0) target = $region13
    $region12: #{tpu_custom_call.1} parent=1 // pred_region
      _
    $region13: #{tpu_custom_call.1} parent=1 // pred_fallthru
      _
    // Predicated region
    $region14: #{tpu_custom_call.1} parent=1 // pred_check
      _
    $region15: #{tpu_custom_call.1} parent=1 // pred_check_branch
      %24 = sbr.rel (0) target = $region17
    $region16: #{tpu_custom_call.1} parent=1 // pred_region
      _
    $region17: #{tpu_custom_call.1} parent=1 // pred_fallthru
      _
    // Predicated region
    $region18: #{tpu_custom_call.1} parent=1 // pred_check
      _
    $region19: #{tpu_custom_call.1} parent=1 // pred_check_branch
      %26 = sbr.rel (0) target = $region21
    $region20: #{tpu_custom_call.1} parent=1 // pred_region
      _
    $region21: #{tpu_custom_call.1} parent=1 // pred_fallthru
      _
    // Predicated region
    $region22: #{tpu_custom_call.1} parent=1 // pred_check
      _
    $region23: #{tpu_custom_call.1} parent=1 // pred_check_branch
      %28 = sbr.rel (0) target = $region25
    $region24: #{tpu_custom_call.1} parent=1 // pred_region
      _
    $region25: #{tpu_custom_call.1} parent=1 // pred_fallthru
      _
    // Predicated region
    $region26: #{tpu_custom_call.1} parent=1 // pred_check
      _
    $region27: #{tpu_custom_call.1} parent=1 // pred_check_branch
      %30 = sbr.rel (0) target = $region29
    $region28: #{tpu_custom_call.1} parent=1 // pred_region
      _
    $region29: #{tpu_custom_call.1} parent=1 // pred_fallthru
      _
    // Predicated region
    $region30: #{tpu_custom_call.1} parent=1 // pred_check
      _
    $region31: #{tpu_custom_call.1} parent=1 // pred_check_branch
      %32 = sbr.rel (0) target = $region33
    $region32: #{tpu_custom_call.1} parent=1 // pred_region
      _
    $region33: #{tpu_custom_call.1} parent=1 // pred_fallthru
      _
    // Predicated region
    $region34: #{tpu_custom_call.1} parent=1 // pred_check
      _
    $region35: #{tpu_custom_call.1} parent=1 // pred_check_branch
      %34 = sbr.rel (0) target = $region37
    $region36: #{tpu_custom_call.1} parent=1 // pred_region
      _
    $region37: #{tpu_custom_call.1} parent=1 // pred_fallthru
      _
    // Predicated region
    $region38: #{tpu_custom_call.1} parent=1 // pred_check
      _
    $region39: #{tpu_custom_call.1} parent=1 // pred_check_branch
      %36 = sbr.rel (0) target = $region41
    $region40: #{tpu_custom_call.1} parent=1 // pred_region
      _
    $region41: #{tpu_custom_call.1} parent=1 // pred_fallthru
      _
    // Predicated region
    $region42: #{tpu_custom_call.1} parent=1 // pred_check
      _
    $region43: #{tpu_custom_call.1} parent=1 // pred_check_branch
      %38 = sbr.rel (0) target = $region45
    $region44: #{tpu_custom_call.1} parent=1 // pred_region
      _
    $region45: #{tpu_custom_call.1} parent=1 // pred_fallthru
      _
    %v39 = vld [vmem:[%s0] sm:$0xff]
    %v40 = vld [vmem:[%s0 + $0x8] sm:$0xff]
    %v41 = vld [vmem:[%s0 + $0x10] sm:$0xff]
    %v42 = vld [vmem:[%s0 + $0x18] sm:$0xff]
    %v43 = vld [vmem:[%s1] sm:$0xff]
    %v44 = vld [vmem:[%s2] sm:$0xff]
    %v45 = vld [vmem:[%s3] sm:$0xff]
    %v46 = vld [vmem:[%s4] sm:$0xff]
    %v47 = vld [vmem:[%s9] sm:$0xf]
    %48 = vrot.lane.b32.xlu0 %v39, 127
    %v49 = vpop.permute.xlu0 %48
    %50 = vrot.lane.b32.xlu0 %v40, 127
    %v51 = vpop.permute.xlu0 %50
    %52 = vrot.lane.b32.xlu0 %v41, 127
    %v53 = vpop.permute.xlu0 %52
    %54 = vrot.lane.b32.xlu0 %v42, 127
    %v55 = vpop.permute.xlu0 %54
    %v56 = vlaneseq
    %v57 = vand.u32 %v56, 127
    %vm58 = vcmp.lt.s32.totalorder %v57, 127
    %v59 = vsel %vm58, %v53, %v55
    %v60 = vsel %vm58, %v51, %v53
    %v61 = vsel %vm58, %v49, %v51
    %v62 = vsel %vm58, %v55, %v49
    %63 = vrot.lane.b32.xlu0 %v39, 126
    %v64 = vpop.permute.xlu0 %63
    %65 = vrot.lane.b32.xlu0 %v40, 126
    %v66 = vpop.permute.xlu0 %65
    %67 = vrot.lane.b32.xlu0 %v41, 126
    %v68 = vpop.permute.xlu0 %67
    %69 = vrot.lane.b32.xlu0 %v42, 126
    %v70 = vpop.permute.xlu0 %69
    %vm71 = vcmp.lt.s32.totalorder %v57, 126
    %v72 = vsel %vm71, %v68, %v70
    %v73 = vsel %vm71, %v66, %v68
    %v74 = vsel %vm71, %v64, %v66
    %v75 = vsel %vm71, %v70, %v64
    %76 = vrot.lane.b32.xlu0 %v39, 112
    %v77 = vpop.permute.xlu0 %76
    %78 = vrot.lane.b32.xlu0 %v40, 112
    %v79 = vpop.permute.xlu0 %78
    %80 = vrot.lane.b32.xlu0 %v41, 112
    %v81 = vpop.permute.xlu0 %80
    %82 = vrot.lane.b32.xlu0 %v42, 112
    %v83 = vpop.permute.xlu0 %82
    %vm84 = vcmp.lt.s32.totalorder %v57, 112
    %v85 = vsel %vm84, %v81, %v83
    %v86 = vsel %vm84, %v79, %v81
    %v87 = vsel %vm84, %v77, %v79
    %v88 = vsel %vm84, %v83, %v77
    %89 = vrot.lane.b32.xlu0 %v39, 111
    %v90 = vpop.permute.xlu0 %89
    %91 = vrot.lane.b32.xlu0 %v40, 111
    %v92 = vpop.permute.xlu0 %91
    %93 = vrot.lane.b32.xlu0 %v41, 111
    %v94 = vpop.permute.xlu0 %93
    %95 = vrot.lane.b32.xlu0 %v42, 111
    %v96 = vpop.permute.xlu0 %95
    %vm97 = vcmp.lt.s32.totalorder %v57, 111
    %v98 = vsel %vm97, %v94, %v96
    %v99 = vsel %vm97, %v92, %v94
    %v100 = vsel %vm97, %v90, %v92
    %v101 = vsel %vm97, %v96, %v90
    %102 = vrot.lane.b32.xlu0 %v39, 110
    %v103 = vpop.permute.xlu0 %102
    %104 = vrot.lane.b32.xlu0 %v40, 110
    %v105 = vpop.permute.xlu0 %104
    %106 = vrot.lane.b32.xlu0 %v41, 110
    %v107 = vpop.permute.xlu0 %106
    %108 = vrot.lane.b32.xlu0 %v42, 110
    %v109 = vpop.permute.xlu0 %108
    %vm110 = vcmp.lt.s32.totalorder %v57, 110
    %v111 = vsel %vm110, %v107, %v109
    %v112 = vsel %vm110, %v105, %v107
    %v113 = vsel %vm110, %v103, %v105
    %v114 = vsel %vm110, %v109, %v103
    %115 = vrot.lane.b32.xlu0 %v39, 96
    %v116 = vpop.permute.xlu0 %115
    %117 = vrot.lane.b32.xlu0 %v40, 96
    %v118 = vpop.permute.xlu0 %117
    %119 = vrot.lane.b32.xlu0 %v41, 96
    %v120 = vpop.permute.xlu0 %119
    %121 = vrot.lane.b32.xlu0 %v42, 96
    %v122 = vpop.permute.xlu0 %121
    %vm123 = vcmp.lt.s32.totalorder %v57, 96
    %v124 = vsel %vm123, %v120, %v122
    %v125 = vsel %vm123, %v118, %v120
    %v126 = vsel %vm123, %v116, %v118
    %v127 = vsel %vm123, %v122, %v116
    %128 = vrot.lane.b32.xlu0 %v39, 95
    %v129 = vpop.permute.xlu0 %128
    %130 = vrot.lane.b32.xlu0 %v40, 95
    %v131 = vpop.permute.xlu0 %130
    %132 = vrot.lane.b32.xlu0 %v41, 95
    %v133 = vpop.permute.xlu0 %132
    %134 = vrot.lane.b32.xlu0 %v42, 95
    %v135 = vpop.permute.xlu0 %134
    %vm136 = vcmp.lt.s32.totalorder %v57, 95
    %v137 = vsel %vm136, %v133, %v135
    %v138 = vsel %vm136, %v131, %v133
    %v139 = vsel %vm136, %v129, %v131
    %v140 = vsel %vm136, %v135, %v129
    %141 = vrot.lane.b32.xlu0 %v39, 94
    %v142 = vpop.permute.xlu0 %141
    %143 = vrot.lane.b32.xlu0 %v40, 94
    %v144 = vpop.permute.xlu0 %143
    %145 = vrot.lane.b32.xlu0 %v41, 94
    %v146 = vpop.permute.xlu0 %145
    %147 = vrot.lane.b32.xlu0 %v42, 94
    %v148 = vpop.permute.xlu0 %147
    %vm149 = vcmp.lt.s32.totalorder %v57, 94
    %v150 = vsel %vm149, %v146, %v148
    %v151 = vsel %vm149, %v144, %v146
    %v152 = vsel %vm149, %v142, %v144
    %v153 = vsel %vm149, %v148, %v142
    %155 = vset.pattern.permute.xlu0 0
    %156 = vperm.xlu0 %155, %v44
    %v157 = vpop.permute.xlu0 %156
    %vm159 = vcmask 588800
    %v161 = vsel %vm159, %v43, 0
    %163 = vmatprep.subr.mxu0 %v40
    %164 = vmatpush1.msra.mxu0 %v39
    %165 = vmatprep.subr.mxu0 %v60
    %166 = vmatpush1.msra.mxu0 %v61
    %167 = vmatprep.subr.mxu0 %v73
    %168 = vmatpush1.msra.mxu0 %v74
    %169 = vmatprep.subr.mxu0 %v86
    %170 = vmatpush1.msra.mxu0 %v87
    %171 = vmatprep.subr.mxu0 %v99
    %172 = vmatpush1.msra.mxu0 %v100
    %173 = vmatprep.subr.mxu0 %v112
    %174 = vmatpush1.msra.mxu0 %v113
    %175 = vmatprep.subr.mxu0 %v125
    %176 = vmatpush1.msra.mxu0 %v126
    %177 = vmatprep.subr.mxu0 %v138
    %178 = vmatpush1.msra.mxu0 %v139
    %179 = vmatprep.subr.mxu0 %v151
    %180 = vmatpush1.msra.mxu0 %v152
    %181 = vmatprep.subr.mxu0 0.0
    %182 = vmatpush1.msra.mxu0 0.0
    %183 = vmatprep.subr.mxu0 0.0
    %184 = vmatpush1.msra.mxu0 0.0
    %185 = vmatprep.subr.mxu0 0.0
    %186 = vmatpush1.msra.mxu0 0.0
    %187 = vmatprep.subr.mxu0 0.0
    %188 = vmatpush1.msra.mxu0 0.0
    %189 = vmatprep.subr.mxu0 0.0
    %190 = vmatpush1.msra.mxu0 0.0
    %191 = vmatprep.subr.mxu0 0.0
    %192 = vmatpush1.msra.mxu0 0.0
    %193 = vmatprep.subr.mxu0 0.0
    %194 = vmatpush1.msra.mxu0 0.0
    %195 = vmatprep.subr.mxu0 0.0
    %196 = vmatpush1.msra.mxu0 0.0
    %197 = vmatprep.subr.mxu0 0.0
    %198 = vmatpush1.msra.mxu0 0.0
    %199 = vmatprep.subr.mxu0 0.0
    %200 = vmatpush1.msra.mxu0 0.0
    %201 = vmatprep.subr.mxu0 0.0
    %202 = vmatpush1.msra.mxu0 0.0
    %203 = vmatprep.subr.mxu0 0.0
    %204 = vmatpush1.msra.mxu0 0.0
    %205 = vmatprep.subr.mxu0 0.0
    %206 = vmatpush1.msra.mxu0 0.0
    %207 = vmatprep.subr.mxu0 0.0
    %208 = vmatpush1.msra.mxu0 0.0
    %209 = vmatprep.subr.mxu0 0.0
    %210 = vmatpush1.msra.mxu0 0.0
    %211 = vmatprep.subr.mxu0 0.0
    %212 = vmatpush1.msra.mxu0 0.0
    %213 = vmatprep.subr.mxu0 0.0
    %214 = vmatpush1.msra.mxu0 0.0
    %215 = vmatprep.subr.mxu0 0.0
    %216 = vmatpush1.msra.mxu0 0.0
    %217 = vmatprep.subr.mxu0 0.0
    %218 = vmatpush1.msra.mxu0 0.0
    %219 = vmatprep.subr.mxu0 0.0
    %220 = vmatpush1.msra.mxu0 0.0
    %221 = vmatprep.subr.mxu0 0.0
    %222 = vmatpush1.msra.mxu0 0.0
    %223 = vmatprep.subr.mxu0 0.0
    %224 = vmatpush1.msra.mxu0 0.0
    %225 = vmatprep.subr.mxu0 0.0
    %226 = vmatpush1.msra.mxu0 0.0
    %227 = vmatprep.mubr.f32.mxu0 0.0
    %228 = vmatmul.mubr.f32.gmra.mrb[0].mxu0 %v161
    %v229 = vpop.f32.mrb[0].mxu0
    %v230 = vadd.f32 %v157, %v229
    %v231 = vpop.f32.mrb[0].mxu0
    %v232 = vadd.f32 %v157, %v231
    %233 = vdwg.mxu0
    %234 = vmatprep.subr.mxu0 %v42
    %235 = vmatpush1.msra.mxu0 %v41
    %236 = vmatprep.subr.mxu0 %v62
    %237 = vmatpush1.msra.mxu0 %v59
    %238 = vmatprep.subr.mxu0 %v75
    %239 = vmatpush1.msra.mxu0 %v72
    %240 = vmatprep.subr.mxu0 %v88
    %241 = vmatpush1.msra.mxu0 %v85
    %242 = vmatprep.subr.mxu0 %v101
    %243 = vmatpush1.msra.mxu0 %v98
    %244 = vmatprep.subr.mxu0 %v114
    %245 = vmatpush1.msra.mxu0 %v111
    %246 = vmatprep.subr.mxu0 %v127
    %247 = vmatpush1.msra.mxu0 %v124
    %248 = vmatprep.subr.mxu0 %v140
    %249 = vmatpush1.msra.mxu0 %v137
    %250 = vmatprep.subr.mxu0 %v153
    %251 = vmatpush1.msra.mxu0 %v150
    %252 = vmatprep.subr.mxu0 0.0
    %253 = vmatpush1.msra.mxu0 0.0
    %254 = vmatprep.subr.mxu0 0.0
    %255 = vmatpush1.msra.mxu0 0.0
    %256 = vmatprep.subr.mxu0 0.0
    %257 = vmatpush1.msra.mxu0 0.0
    %258 = vmatprep.subr.mxu0 0.0
    %259 = vmatpush1.msra.mxu0 0.0
    %260 = vmatprep.subr.mxu0 0.0
    %261 = vmatpush1.msra.mxu0 0.0
    %262 = vmatprep.subr.mxu0 0.0
    %263 = vmatpush1.msra.mxu0 0.0
    %264 = vmatprep.subr.mxu0 0.0
    %265 = vmatpush1.msra.mxu0 0.0
    %266 = vmatprep.subr.mxu0 0.0
    %267 = vmatpush1.msra.mxu0 0.0
    %268 = vmatprep.subr.mxu0 0.0
    %269 = vmatpush1.msra.mxu0 0.0
    %270 = vmatprep.subr.mxu0 0.0
    %271 = vmatpush1.msra.mxu0 0.0
    %272 = vmatprep.subr.mxu0 0.0
    %273 = vmatpush1.msra.mxu0 0.0
    %274 = vmatprep.subr.mxu0 0.0
    %275 = vmatpush1.msra.mxu0 0.0
    %276 = vmatprep.subr.mxu0 0.0
    %277 = vmatpush1.msra.mxu0 0.0
    %278 = vmatprep.subr.mxu0 0.0
    %279 = vmatpush1.msra.mxu0 0.0
    %280 = vmatprep.subr.mxu0 0.0
    %281 = vmatpush1.msra.mxu0 0.0
    %282 = vmatprep.subr.mxu0 0.0
    %283 = vmatpush1.msra.mxu0 0.0
    %284 = vmatprep.subr.mxu0 0.0
    %285 = vmatpush1.msra.mxu0 0.0
    %286 = vmatprep.subr.mxu0 0.0
    %287 = vmatpush1.msra.mxu0 0.0
    %288 = vmatprep.subr.mxu0 0.0
    %289 = vmatpush1.msra.mxu0 0.0
    %290 = vmatprep.subr.mxu0 0.0
    %291 = vmatpush1.msra.mxu0 0.0
    %292 = vmatprep.subr.mxu0 0.0
    %293 = vmatpush1.msra.mxu0 0.0
    %294 = vmatprep.subr.mxu0 0.0
    %295 = vmatpush1.msra.mxu0 0.0
    %296 = vmatprep.subr.mxu0 0.0
    %297 = vmatpush1.msra.mxu0 0.0
    %298 = vmatprep.mubr.f32.mxu0 0.0
    %299 = vmatmul.mubr.f32.gmra.mrb[0].mxu0 %v161
    %v300 = vpop.f32.mrb[0].mxu0
    %v301 = vadd.f32 %v157, %v300
    %v302 = vpop.f32.mrb[0].mxu0
    %v303 = vadd.f32 %v157, %v302
    %304 = vdwg.mxu0
    %v306 = vlaneseq
    %v307 = vshrl.u32 %v306, 7
    %v308 = vsub.s32 0, %v307
    %v309 = vrot.slane %v47, %v308
    %v310 = vlaneseq
    %v311 = vshrl.u32 %v310, 7
    %v312 = vsub.s32 1, %v311
    %v313 = vrot.slane %v47, %v312
    %v314 = vlaneseq
    %v315 = vshrl.u32 %v314, 7
    %v316 = vsub.s32 2, %v315
    %v317 = vrot.slane %v47, %v316
    %v318 = vlaneseq
    %v319 = vshrl.u32 %v318, 7
    %v320 = vsub.s32 3, %v319
    %v321 = vrot.slane %v47, %v320
    %v326 = vmul.f32 %v230, %v309
    %v327 = vmul.f32 %v232, %v313
    %v328 = vmul.f32 %v301, %v317
    %v329 = vmul.f32 %v303, %v321
    %v330 = vadd.f32 %v326, %v327
    %v331 = vadd.f32 %v330, %v328
    %v332 = vadd.f32 %v331, %v329
    %333 = vadd.xlane.f32.xlu0 %v332
    %v334 = vpop.xlane.xlu0 %333
    %v335 = vmul.f32 %v230, %v230
    %v336 = vmul.f32 %v232, %v232
    %v337 = vmul.f32 %v301, %v301
    %v338 = vmul.f32 %v303, %v303
    %v339 = vmul.f32 %v335, %v309
    %v340 = vmul.f32 %v336, %v313
    %v341 = vmul.f32 %v337, %v317
    %v342 = vmul.f32 %v338, %v321
    %v343 = vadd.f32 %v339, %v340
    %v344 = vadd.f32 %v343, %v341
    %v345 = vadd.f32 %v344, %v342
    %346 = vadd.xlane.f32.xlu0 %v345
    %v347 = vpop.xlane.xlu0 %346
    %v348 = vmul.f32 %v334, 0.0025510204
    %v349 = vmul.f32 %v347, 0.0025510204
    %v350 = vmul.f32 %v348, %v348
    %v351 = vsub.f32 %v349, %v350
    %v352 = vmax.f32 %v351, 0.0
    %v353 = vadd.f32 %v352, 1e-05
    %v354 = vrsqrt.pop %v353
    %v355 = vmul.f32 %v45, %v354
    %v356 = vmul.f32 %v348, %v355
    %v357 = vsub.f32 %v46, %v356
    %359 = vset.pattern.permute.xlu0 0
    %360 = vperm.xlu0 %359, %v355
    %v361 = vpop.permute.xlu0 %360
    %v363 = vmul.f32 %v230, %v361
    %v364 = vmul.f32 %v232, %v361
    %v365 = vmul.f32 %v301, %v361
    %v366 = vmul.f32 %v303, %v361
    %368 = vset.pattern.permute.xlu0 0
    %369 = vperm.xlu0 %368, %v357
    %v370 = vpop.permute.xlu0 %369
    %v372 = vadd.f32 %v363, %v370
    %v373 = vadd.f32 %v364, %v370
    %v374 = vadd.f32 %v365, %v370
    %v375 = vadd.f32 %v366, %v370
    %v376 = vmax.f32 %v372, 0.0
    %v377 = vmax.f32 %v373, 0.0
    %v378 = vmax.f32 %v374, 0.0
    %v379 = vmax.f32 %v375, 0.0
    %v380 = vld [vmem:[%s5] sm:$0xff]
    %v381 = vld [vmem:[%s6] sm:$0xff]
    %v382 = vld [vmem:[%s7] sm:$0xff]
    %v383 = vld [vmem:[%s8] sm:$0xff]
    %v384 = vld [vmem:[%s10] sm:$0xf]
    %385 = vrot.lane.b32.xlu0 %v376, 127
    %v386 = vpop.permute.xlu0 %385
    %387 = vrot.lane.b32.xlu0 %v377, 127
    %v388 = vpop.permute.xlu0 %387
    %389 = vrot.lane.b32.xlu0 %v378, 127
    %v390 = vpop.permute.xlu0 %389
    %391 = vrot.lane.b32.xlu0 %v379, 127
    %v392 = vpop.permute.xlu0 %391
    %v393 = vsel %vm58, %v390, %v392
    %v394 = vsel %vm58, %v388, %v390
    %v395 = vsel %vm58, %v386, %v388
    %v396 = vsel %vm58, %v392, %v386
    %397 = vrot.lane.b32.xlu0 %v376, 126
    %v398 = vpop.permute.xlu0 %397
    %399 = vrot.lane.b32.xlu0 %v377, 126
    %v400 = vpop.permute.xlu0 %399
    %401 = vrot.lane.b32.xlu0 %v378, 126
    %v402 = vpop.permute.xlu0 %401
    %403 = vrot.lane.b32.xlu0 %v379, 126
    %v404 = vpop.permute.xlu0 %403
    %v405 = vsel %vm71, %v402, %v404
    %v406 = vsel %vm71, %v400, %v402
    %v407 = vsel %vm71, %v398, %v400
    %v408 = vsel %vm71, %v404, %v398
    %409 = vrot.lane.b32.xlu0 %v376, 112
    %v410 = vpop.permute.xlu0 %409
    %411 = vrot.lane.b32.xlu0 %v377, 112
    %v412 = vpop.permute.xlu0 %411
    %413 = vrot.lane.b32.xlu0 %v378, 112
    %v414 = vpop.permute.xlu0 %413
    %415 = vrot.lane.b32.xlu0 %v379, 112
    %v416 = vpop.permute.xlu0 %415
    %v417 = vsel %vm84, %v414, %v416
    %v418 = vsel %vm84, %v412, %v414
    %v419 = vsel %vm84, %v410, %v412
    %v420 = vsel %vm84, %v416, %v410
    %421 = vrot.lane.b32.xlu0 %v376, 111
    %v422 = vpop.permute.xlu0 %421
    %423 = vrot.lane.b32.xlu0 %v377, 111
    %v424 = vpop.permute.xlu0 %423
    %425 = vrot.lane.b32.xlu0 %v378, 111
    %v426 = vpop.permute.xlu0 %425
    %427 = vrot.lane.b32.xlu0 %v379, 111
    %v428 = vpop.permute.xlu0 %427
    %v429 = vsel %vm97, %v426, %v428
    %v430 = vsel %vm97, %v424, %v426
    %v431 = vsel %vm97, %v422, %v424
    %v432 = vsel %vm97, %v428, %v422
    %433 = vrot.lane.b32.xlu0 %v376, 110
    %v434 = vpop.permute.xlu0 %433
    %435 = vrot.lane.b32.xlu0 %v377, 110
    %v436 = vpop.permute.xlu0 %435
    %437 = vrot.lane.b32.xlu0 %v378, 110
    %v438 = vpop.permute.xlu0 %437
    %439 = vrot.lane.b32.xlu0 %v379, 110
    %v440 = vpop.permute.xlu0 %439
    %v441 = vsel %vm110, %v438, %v440
    %v442 = vsel %vm110, %v436, %v438
    %v443 = vsel %vm110, %v434, %v436
    %v444 = vsel %vm110, %v440, %v434
    %445 = vrot.lane.b32.xlu0 %v376, 96
    %v446 = vpop.permute.xlu0 %445
    %447 = vrot.lane.b32.xlu0 %v377, 96
    %v448 = vpop.permute.xlu0 %447
    %449 = vrot.lane.b32.xlu0 %v378, 96
    %v450 = vpop.permute.xlu0 %449
    %451 = vrot.lane.b32.xlu0 %v379, 96
    %v452 = vpop.permute.xlu0 %451
    %v453 = vsel %vm123, %v450, %v452
    %v454 = vsel %vm123, %v448, %v450
    %v455 = vsel %vm123, %v446, %v448
    %v456 = vsel %vm123, %v452, %v446
    %457 = vrot.lane.b32.xlu0 %v376, 95
    %v458 = vpop.permute.xlu0 %457
    %459 = vrot.lane.b32.xlu0 %v377, 95
    %v460 = vpop.permute.xlu0 %459
    %461 = vrot.lane.b32.xlu0 %v378, 95
    %v462 = vpop.permute.xlu0 %461
    %463 = vrot.lane.b32.xlu0 %v379, 95
    %v464 = vpop.permute.xlu0 %463
    %v465 = vsel %vm136, %v462, %v464
    %v466 = vsel %vm136, %v460, %v462
    %v467 = vsel %vm136, %v458, %v460
    %v468 = vsel %vm136, %v464, %v458
    %469 = vrot.lane.b32.xlu0 %v376, 94
    %v470 = vpop.permute.xlu0 %469
    %471 = vrot.lane.b32.xlu0 %v377, 94
    %v472 = vpop.permute.xlu0 %471
    %473 = vrot.lane.b32.xlu0 %v378, 94
    %v474 = vpop.permute.xlu0 %473
    %475 = vrot.lane.b32.xlu0 %v379, 94
    %v476 = vpop.permute.xlu0 %475
    %v477 = vsel %vm149, %v474, %v476
    %v478 = vsel %vm149, %v472, %v474
    %v479 = vsel %vm149, %v470, %v472
    %v480 = vsel %vm149, %v476, %v470
    %482 = vset.pattern.permute.xlu0 0
    %483 = vperm.xlu0 %482, %v381
    %v484 = vpop.permute.xlu0 %483
    %v487 = vsel %vm159, %v380, 0
    %489 = vmatprep.subr.mxu0 %v377
    %490 = vmatpush1.msra.mxu0 %v376
    %491 = vmatprep.subr.mxu0 %v394
    %492 = vmatpush1.msra.mxu0 %v395
    %493 = vmatprep.subr.mxu0 %v406
    %494 = vmatpush1.msra.mxu0 %v407
    %495 = vmatprep.subr.mxu0 %v418
    %496 = vmatpush1.msra.mxu0 %v419
    %497 = vmatprep.subr.mxu0 %v430
    %498 = vmatpush1.msra.mxu0 %v431
    %499 = vmatprep.subr.mxu0 %v442
    %500 = vmatpush1.msra.mxu0 %v443
    %501 = vmatprep.subr.mxu0 %v454
    %502 = vmatpush1.msra.mxu0 %v455
    %503 = vmatprep.subr.mxu0 %v466
    %504 = vmatpush1.msra.mxu0 %v467
    %505 = vmatprep.subr.mxu0 %v478
    %506 = vmatpush1.msra.mxu0 %v479
    %507 = vmatprep.subr.mxu0 0.0
    %508 = vmatpush1.msra.mxu0 0.0
    %509 = vmatprep.subr.mxu0 0.0
    %510 = vmatpush1.msra.mxu0 0.0
    %511 = vmatprep.subr.mxu0 0.0
    %512 = vmatpush1.msra.mxu0 0.0
    %513 = vmatprep.subr.mxu0 0.0
    %514 = vmatpush1.msra.mxu0 0.0
    %515 = vmatprep.subr.mxu0 0.0
    %516 = vmatpush1.msra.mxu0 0.0
    %517 = vmatprep.subr.mxu0 0.0
    %518 = vmatpush1.msra.mxu0 0.0
    %519 = vmatprep.subr.mxu0 0.0
    %520 = vmatpush1.msra.mxu0 0.0
    %521 = vmatprep.subr.mxu0 0.0
    %522 = vmatpush1.msra.mxu0 0.0
    %523 = vmatprep.subr.mxu0 0.0
    %524 = vmatpush1.msra.mxu0 0.0
    %525 = vmatprep.subr.mxu0 0.0
    %526 = vmatpush1.msra.mxu0 0.0
    %527 = vmatprep.subr.mxu0 0.0
    %528 = vmatpush1.msra.mxu0 0.0
    %529 = vmatprep.subr.mxu0 0.0
    %530 = vmatpush1.msra.mxu0 0.0
    %531 = vmatprep.subr.mxu0 0.0
    %532 = vmatpush1.msra.mxu0 0.0
    %533 = vmatprep.subr.mxu0 0.0
    %534 = vmatpush1.msra.mxu0 0.0
    %535 = vmatprep.subr.mxu0 0.0
    %536 = vmatpush1.msra.mxu0 0.0
    %537 = vmatprep.subr.mxu0 0.0
    %538 = vmatpush1.msra.mxu0 0.0
    %539 = vmatprep.subr.mxu0 0.0
    %540 = vmatpush1.msra.mxu0 0.0
    %541 = vmatprep.subr.mxu0 0.0
    %542 = vmatpush1.msra.mxu0 0.0
    %543 = vmatprep.subr.mxu0 0.0
    %544 = vmatpush1.msra.mxu0 0.0
    %545 = vmatprep.subr.mxu0 0.0
    %546 = vmatpush1.msra.mxu0 0.0
    %547 = vmatprep.subr.mxu0 0.0
    %548 = vmatpush1.msra.mxu0 0.0
    %549 = vmatprep.subr.mxu0 0.0
    %550 = vmatpush1.msra.mxu0 0.0
    %551 = vmatprep.subr.mxu0 0.0
    %552 = vmatpush1.msra.mxu0 0.0
    %553 = vmatprep.mubr.f32.mxu0 0.0
    %554 = vmatmul.mubr.f32.gmra.mrb[0].mxu0 %v487
    %v555 = vpop.f32.mrb[0].mxu0
    %v556 = vadd.f32 %v484, %v555
    %v557 = vpop.f32.mrb[0].mxu0
    %v558 = vadd.f32 %v484, %v557
    %559 = vdwg.mxu0
    %560 = vmatprep.subr.mxu0 %v379
    %561 = vmatpush1.msra.mxu0 %v378
    %562 = vmatprep.subr.mxu0 %v396
    %563 = vmatpush1.msra.mxu0 %v393
    %564 = vmatprep.subr.mxu0 %v408
    %565 = vmatpush1.msra.mxu0 %v405
    %566 = vmatprep.subr.mxu0 %v420
    %567 = vmatpush1.msra.mxu0 %v417
    %568 = vmatprep.subr.mxu0 %v432
    %569 = vmatpush1.msra.mxu0 %v429
    %570 = vmatprep.subr.mxu0 %v444
    %571 = vmatpush1.msra.mxu0 %v441
    %572 = vmatprep.subr.mxu0 %v456
    %573 = vmatpush1.msra.mxu0 %v453
    %574 = vmatprep.subr.mxu0 %v468
    %575 = vmatpush1.msra.mxu0 %v465
    %576 = vmatprep.subr.mxu0 %v480
    %577 = vmatpush1.msra.mxu0 %v477
    %578 = vmatprep.subr.mxu0 0.0
    %579 = vmatpush1.msra.mxu0 0.0
    %580 = vmatprep.subr.mxu0 0.0
    %581 = vmatpush1.msra.mxu0 0.0
    %582 = vmatprep.subr.mxu0 0.0
    %583 = vmatpush1.msra.mxu0 0.0
    %584 = vmatprep.subr.mxu0 0.0
    %585 = vmatpush1.msra.mxu0 0.0
    %586 = vmatprep.subr.mxu0 0.0
    %587 = vmatpush1.msra.mxu0 0.0
    %588 = vmatprep.subr.mxu0 0.0
    %589 = vmatpush1.msra.mxu0 0.0
    %590 = vmatprep.subr.mxu0 0.0
    %591 = vmatpush1.msra.mxu0 0.0
    %592 = vmatprep.subr.mxu0 0.0
    %593 = vmatpush1.msra.mxu0 0.0
    %594 = vmatprep.subr.mxu0 0.0
    %595 = vmatpush1.msra.mxu0 0.0
    %596 = vmatprep.subr.mxu0 0.0
    %597 = vmatpush1.msra.mxu0 0.0
    %598 = vmatprep.subr.mxu0 0.0
    %599 = vmatpush1.msra.mxu0 0.0
    %600 = vmatprep.subr.mxu0 0.0
    %601 = vmatpush1.msra.mxu0 0.0
    %602 = vmatprep.subr.mxu0 0.0
    %603 = vmatpush1.msra.mxu0 0.0
    %604 = vmatprep.subr.mxu0 0.0
    %605 = vmatpush1.msra.mxu0 0.0
    %606 = vmatprep.subr.mxu0 0.0
    %607 = vmatpush1.msra.mxu0 0.0
    %608 = vmatprep.subr.mxu0 0.0
    %609 = vmatpush1.msra.mxu0 0.0
    %610 = vmatprep.subr.mxu0 0.0
    %611 = vmatpush1.msra.mxu0 0.0
    %612 = vmatprep.subr.mxu0 0.0
    %613 = vmatpush1.msra.mxu0 0.0
    %614 = vmatprep.subr.mxu0 0.0
    %615 = vmatpush1.msra.mxu0 0.0
    %616 = vmatprep.subr.mxu0 0.0
    %617 = vmatpush1.msra.mxu0 0.0
    %618 = vmatprep.subr.mxu0 0.0
    %619 = vmatpush1.msra.mxu0 0.0
    %620 = vmatprep.subr.mxu0 0.0
    %621 = vmatpush1.msra.mxu0 0.0
    %622 = vmatprep.subr.mxu0 0.0
    %623 = vmatpush1.msra.mxu0 0.0
    %624 = vmatprep.mubr.f32.mxu0 0.0
    %625 = vmatmul.mubr.f32.gmra.mrb[0].mxu0 %v487
    %v626 = vpop.f32.mrb[0].mxu0
    %v627 = vadd.f32 %v484, %v626
    %v628 = vpop.f32.mrb[0].mxu0
    %v629 = vadd.f32 %v484, %v628
    %630 = vdwg.mxu0
    %v632 = vlaneseq
    %v633 = vshrl.u32 %v632, 7
    %v634 = vsub.s32 0, %v633
    %v635 = vrot.slane %v384, %v634
    %v636 = vlaneseq
    %v637 = vshrl.u32 %v636, 7
    %v638 = vsub.s32 1, %v637
    %v639 = vrot.slane %v384, %v638
    %v640 = vlaneseq
    %v641 = vshrl.u32 %v640, 7
    %v642 = vsub.s32 2, %v641
    %v643 = vrot.slane %v384, %v642
    %v644 = vlaneseq
    %v645 = vshrl.u32 %v644, 7
    %v646 = vsub.s32 3, %v645
    %v647 = vrot.slane %v384, %v646
    %v652 = vmul.f32 %v556, %v635
    %v653 = vmul.f32 %v558, %v639
    %v654 = vmul.f32 %v627, %v643
    %v655 = vmul.f32 %v629, %v647
    %v656 = vadd.f32 %v652, %v653
    %v657 = vadd.f32 %v656, %v654
    %v658 = vadd.f32 %v657, %v655
    %659 = vadd.xlane.f32.xlu0 %v658
    %v660 = vpop.xlane.xlu0 %659
    %v661 = vmul.f32 %v556, %v556
    %v662 = vmul.f32 %v558, %v558
    %v663 = vmul.f32 %v627, %v627
    %v664 = vmul.f32 %v629, %v629
    %v665 = vmul.f32 %v661, %v635
    %v666 = vmul.f32 %v662, %v639
    %v667 = vmul.f32 %v663, %v643
    %v668 = vmul.f32 %v664, %v647
    %v669 = vadd.f32 %v665, %v666
    %v670 = vadd.f32 %v669, %v667
    %v671 = vadd.f32 %v670, %v668
    %672 = vadd.xlane.f32.xlu0 %v671
    %v673 = vpop.xlane.xlu0 %672
    %v674 = vmul.f32 %v660, 0.0034722222
    %v675 = vmul.f32 %v673, 0.0034722222
    %v676 = vmul.f32 %v674, %v674
    %v677 = vsub.f32 %v675, %v676
    %v678 = vmax.f32 %v677, 0.0
    %v679 = vadd.f32 %v678, 1e-05
    %v680 = vrsqrt.pop %v679
    %v681 = vmul.f32 %v382, %v680
    %v682 = vmul.f32 %v674, %v681
    %v683 = vsub.f32 %v383, %v682
    %685 = vset.pattern.permute.xlu0 0
    %686 = vperm.xlu0 %685, %v681
    %v687 = vpop.permute.xlu0 %686
    %v689 = vmul.f32 %v556, %v687
    %v690 = vmul.f32 %v558, %v687
    %v691 = vmul.f32 %v627, %v687
    %v692 = vmul.f32 %v629, %v687
    %694 = vset.pattern.permute.xlu0 0
    %695 = vperm.xlu0 %694, %v683
    %v696 = vpop.permute.xlu0 %695
    %v698 = vadd.f32 %v689, %v696
    %v699 = vadd.f32 %v690, %v696
    %v700 = vadd.f32 %v691, %v696
    %v701 = vadd.f32 %v692, %v696
    %v702 = vmax.f32 %v698, 0.0
    %v703 = vmax.f32 %v699, 0.0
    %v704 = vmax.f32 %v700, 0.0
    %v705 = vmax.f32 %v701, 0.0
    %706 = vst [vmem:[#allocation2] sm:$0xff] %v702
    %707 = vst [vmem:[#allocation2 + $0x8] sm:$0xff] %v703
    %708 = vst [vmem:[#allocation2 + $0x10] sm:$0xff] %v704
    %709 = vst [vmem:[#allocation2 + $0x18] sm:$0xff] %v705
    // Predicated region
    $region46: #{tpu_custom_call.1} parent=1 // pred_check
      _
    $region47: #{tpu_custom_call.1} parent=1 // pred_check_branch
      %711 = sbr.rel (0) target = $region49
    $region48: #{tpu_custom_call.1} parent=1 // pred_region
      %s713 = ssub.s32 512, 512
      %714 = vsyncadd [#allocation3], %s713
      %s716 = sshll.u32 [#allocation2], 4
      %s717 = int_to_ptr.vmem [resolvable:$true] %s716
      %719 = dma.vmem_to_hbm [thread:$0]  %s717, 512, %s11, [#allocation3]
    $region49: #{tpu_custom_call.1} parent=1 // pred_fallthru
      _
    // Predicated region
    $region50: #{tpu_custom_call.1} parent=1 // pred_check
      _
    $region51: #{tpu_custom_call.1} parent=1 // pred_check_branch
      %721 = sbr.rel (0) target = $region53
    $region52: #{tpu_custom_call.1} parent=1 // pred_region
      %722 = dma.done [#allocation3], 512
    $region53: #{tpu_custom_call.1} parent=1 // pred_fallthru
      _
    %723 = vsyncpa [#allocation3], 1

</llo_original>
